<compile_context>
chip_gen: v5e
topology: v5e:2x2
jax: 0.10.0
libtpu: 0.0.40
codegen_flags: <defaults>
</compile_context>

<pallas_src>
import functools

import jax
import jax.numpy as jnp
from jax import lax
from jax.experimental import pallas as pl
from jax.experimental.pallas import tpu as pltpu


def _round_up(x, m):
    return (x + m - 1) // m * m


def _atrous_fused_kernel(xa_ref, xh_ref, w_ref, b_ref, o_ref,
                         xbuf_ref, slab_ref, *,
                         rates, Wp, K, pad_max, Cin, tile_l, halo):
    # xa_ref  : (1, Cin, tile_l)       current lane tile of flattened padded image
    # xh_ref  : (1, Cin, halo)         halo lanes immediately after the tile
    # w_ref   : (Cout, Dm)             lane-dense fused weight (1x1 folded in), bf16
    # b_ref   : (Cout, 1)              fused bias, f32
    # o_ref   : (1, Cout, tile_l)      output lanes (padded-row frame), f32
    # xbuf_ref: (Cin, tile_l + halo)   contiguous tile+halo window (scratch)
    # slab_ref: (Dm, tile_l)           im2col slab (scratch)

    # Assemble the contiguous input window once.
    xbuf_ref[:, :tile_l] = xa_ref[0]
    xbuf_ref[:, tile_l:] = xh_ref[0]

    # im2col: every conv tap is a contiguous lane slice of the window.
    ti = 0
    for r in rates:
        base = pad_max - r * (K // 2)
        for ky in range(K):
            for kx in range(K):
                s = (base + ky * r) * Wp + (base + kx * r)
                slab_ref[ti * Cin:(ti + 1) * Cin, :] = xbuf_ref[:, s:s + tile_l]
                ti += 1

    # Single deep contraction on the MXU, f32 accumulate; bias added once.
    acc = jnp.dot(w_ref[...], slab_ref[...], preferred_element_type=jnp.float32)
    res = acc + b_ref[...]
    o_ref[...] = res.reshape((1,) + res.shape).astype(o_ref.dtype)


def stacked_atrous_convs(x_nchw, atrous_w, atrous_b, lin_w, lin_b, rates,
                         kernel_size=3, *, compute_dtype=jnp.bfloat16,
                         target_tile_lanes=2048):
    """Pallas implementation of StackedAtrousConvs.forward.

    x_nchw   : (N, Cin, H, W) float32
    atrous_w : (R, K, K, Cin, Cin)   per-rate weights (kH, kW, Cin_in, Cin_out)
    atrous_b : (R, Cin)
    lin_w    : (R*Cin, Cout)
    lin_b    : (Cout,)
    returns  : (N, Cout, H, W) float32
    """
    N, Cin, H, W = x_nchw.shape
    R = len(rates)
    Cout = lin_w.shape[-1]
    K = kernel_size
    p = max(rates) * (K // 2)

    Wp = W + 2 * p                      # padded row width (row stride in flat frame)
    L = H * Wp                          # output length in the padded-row frame
    s_max = 2 * p * Wp + 2 * p          # largest tap lane offset
    halo = _round_up(max(s_max, 1), 128)

    # Lane-tile size: multiple of `halo`, ~target lanes, bounded by the image.
    tile_l = min(_round_up(target_tile_lanes, halo), _round_up(L, halo))
    tile_l = max(tile_l, halo)
    num_tiles = -(-L // tile_l)
    halo_blocks = tile_l // halo
    FL = num_tiles * tile_l + halo      # flat length: every tile+halo in bounds
    Dm = R * K * K * Cin

    # --- Fold the 1x1 conv into per-tap weights; flatten lane-dense (wrapper precompute).
    lin_w_r = lin_w.reshape(R, Cin, Cout)                          # [r, mid, out]
    w_comb = jnp.einsum('rklim,rmo->rkloi', atrous_w, lin_w_r)     # (R,K,K,Cout,Cin)
    w2d = jnp.moveaxis(w_comb, 3, 0).reshape(Cout, Dm)             # (Cout, R*K*K*Cin)
    w2d = w2d.astype(compute_dtype)
    b_comb = lin_b + jnp.einsum('rm,rmo->o', atrous_b, lin_w_r)    # (Cout,)
    b_col = b_comb.reshape(Cout, 1).astype(jnp.float32)

    # --- Single spatial zero-pad, flatten rows, pad the flat axis, cast stream to bf16.
    xpad = jnp.pad(x_nchw, ((0, 0), (0, 0), (p, p), (p, p)))
    xflat = xpad.reshape(N, Cin, (H + 2 * p) * Wp)
    xflat = jnp.pad(xflat, ((0, 0), (0, 0), (0, FL - xflat.shape[-1])))
    xflat = xflat.astype(compute_dtype)

    kernel = functools.partial(
        _atrous_fused_kernel, rates=tuple(rates), Wp=Wp, K=K, pad_max=p,
        Cin=Cin, tile_l=tile_l, halo=halo)

    out_flat = pl.pallas_call(
        kernel,
        out_shape=jax.ShapeDtypeStruct((N, Cout, num_tiles * tile_l), jnp.float32),
        grid=(N, num_tiles),
        in_specs=[
            # current lane tile
            pl.BlockSpec((1, Cin, tile_l), lambda n, t: (n, 0, t)),
            # halo: the `halo` lanes immediately after the tile (same array)
            pl.BlockSpec((1, Cin, halo),
                         lambda n, t: (n, 0, (t + 1) * halo_blocks)),
            pl.BlockSpec((Cout, Dm), lambda n, t: (0, 0)),
            pl.BlockSpec((Cout, 1), lambda n, t: (0, 0)),
        ],
        out_specs=pl.BlockSpec((1, Cout, tile_l), lambda n, t: (n, 0, t)),
        scratch_shapes=[
            pltpu.VMEM((Cin, tile_l + halo), compute_dtype),   # tile+halo window
            pltpu.VMEM((Dm, tile_l), compute_dtype),           # im2col slab
        ],
        compiler_params=pltpu.CompilerParams(
            dimension_semantics=("parallel", "parallel"),
            vmem_limit_bytes=32 * 1024 * 1024),
    )(xflat, xflat, w2d, b_col)

    # Resolve the padded-row frame: keep the H valid rows, drop pad columns.
    # (see TODO(synk) above about removing this pass for W % 128 == 0)
    out = out_flat[:, :, :L].reshape(N, Cout, H, Wp)[:, :, :, :W]
    return out


def _reference(x_nchw, atrous_w, atrous_b, lin_w, lin_b, rates, K=3):
    """Pure-JAX reference matching the PyTorch module (NCHW convs, f32)."""
    dn = ("NCHW", "OIHW", "NCHW")
    feats = []
    for ri, r in enumerate(rates):
        w_oihw = jnp.transpose(atrous_w[ri], (3, 2, 0, 1))  # (Cout,Cin,kH,kW)
        pad = r * (K // 2)
        y = lax.conv_general_dilated(
            x_nchw, w_oihw, window_strides=(1, 1),
            padding=((pad, pad), (pad, pad)),
            rhs_dilation=(r, r), dimension_numbers=dn)
        y = y + atrous_b[ri][None, :, None, None]
        feats.append(y)
    z = jnp.concatenate(feats, axis=1)
    w_lin = jnp.transpose(lin_w, (1, 0))[:, :, None, None]  # (Cout, R*Cin, 1, 1)
    out = lax.conv_general_dilated(z, w_lin, (1, 1), "VALID",
                                   dimension_numbers=dn)
    return out + lin_b[None, :, None, None]


if __name__ == "__main__":
    key = jax.random.PRNGKey(0)
    N, Cin, H, W = 2, 4, 16, 16
    Cout = 8
    rates = [1, 2]          # atrous_rates_str = "1,2"
    K = 3
    R = len(rates)

    k1, k2, k3, k4, k5 = jax.random.split(key, 5)
    x = jax.random.normal(k1, (N, Cin, H, W), dtype=jnp.float32)
    atrous_w = 0.1 * jax.random.normal(k2, (R, K, K, Cin, Cin), dtype=jnp.float32)
    atrous_b = 0.1 * jax.random.normal(k3, (R, Cin), dtype=jnp.float32)
    lin_w = 0.1 * jax.random.normal(k4, (R * Cin, Cout), dtype=jnp.float32)
    lin_b = 0.1 * jax.random.normal(k5, (Cout,), dtype=jnp.float32)

    ref = jax.block_until_ready(
        _reference(x, atrous_w, atrous_b, lin_w, lin_b, rates, K))

    # Default tiling (single lane tile at this toy size).
    out = jax.block_until_ready(
        stacked_atrous_convs(x, atrous_w, atrous_b, lin_w, lin_b, rates, K))
    assert out.shape == (N, Cout, H, W), out.shape
    err = float(jnp.max(jnp.abs(out - ref)))
    assert jnp.allclose(out, ref, atol=2e-2, rtol=2e-2), err

    # Force several lane tiles to exercise the halo / tile-seam path.
    out_t = jax.block_until_ready(
        stacked_atrous_convs(x, atrous_w, atrous_b, lin_w, lin_b, rates, K,
                             target_tile_lanes=128))
    err_t = float(jnp.max(jnp.abs(out_t - ref)))
    assert jnp.allclose(out_t, ref, atol=2e-2, rtol=2e-2), err_t

    print("KERNEL_OK")
</pallas_src>

<mosaic_0001>
module attributes {stable_mosaic.version = 11 : i64} {
  func.func @_atrous_fused_kernel(%arg0: i32, %arg1: i32, %arg2: memref<1x4x384xbf16, #tpu.memory_space<vmem>>, %arg3: memref<1x4x128xbf16, #tpu.memory_space<vmem>>, %arg4: memref<8x72xbf16, #tpu.memory_space<vmem>>, %arg5: memref<8x1xf32, #tpu.memory_space<vmem>>, %arg6: memref<1x8x384xf32, #tpu.memory_space<vmem>>, %arg7: memref<4x512xbf16, #tpu.memory_space<vmem>>, %arg8: memref<72x384xbf16, #tpu.memory_space<vmem>>) attributes {dimension_semantics = [#tpu.dimension_semantics<parallel>, #tpu.dimension_semantics<parallel>], iteration_bounds = array<i64: 2, 1>, scalar_prefetch = 0 : i64, scratch_operands = 2 : i64, tpu.core_type = #tpu.core_type<tc>, window_params = [{transform_indices = @transform_0, window_bounds = array<i64: 1, 4, 384>}, {transform_indices = @transform_1, window_bounds = array<i64: 1, 4, 128>}, {pipeline_mode = #tpu.pipeline_mode<synchronous>, transform_indices = @transform_2, window_bounds = array<i64: 8, 72>}, {pipeline_mode = #tpu.pipeline_mode<synchronous>, transform_indices = @transform_3, window_bounds = array<i64: 8, 1>}, {transform_indices = @transform_4, window_bounds = array<i64: 1, 8, 384>}]} {
    %c0 = arith.constant 0 : index
    %c0_0 = arith.constant 0 : index
    %c0_1 = arith.constant 0 : index
    %0 = vector.load %arg2[%c0, %c0_0, %c0_1] : memref<1x4x384xbf16, #tpu.memory_space<vmem>>, vector<1x4x384xbf16>
    %1 = vector.shape_cast %0 : vector<1x4x384xbf16> to vector<4x384xbf16>
    %c0_2 = arith.constant 0 : index
    %c0_3 = arith.constant 0 : index
    %2 = vector.load %arg7[%c0_2, %c0_3] : memref<4x512xbf16, #tpu.memory_space<vmem>>, vector<4x384xbf16>
    tpu.vector_store %arg7[%c0_2, %c0_3], %1 {strides = array<i32>} : memref<4x512xbf16, #tpu.memory_space<vmem>>, vector<4x384xbf16>,
    %c0_4 = arith.constant 0 : index
    %c0_5 = arith.constant 0 : index
    %c0_6 = arith.constant 0 : index
    %3 = vector.load %arg3[%c0_4, %c0_5, %c0_6] : memref<1x4x128xbf16, #tpu.memory_space<vmem>>, vector<1x4x128xbf16>
    %4 = vector.shape_cast %3 : vector<1x4x128xbf16> to vector<4x128xbf16>
    %c0_7 = arith.constant 0 : index
    %c384 = arith.constant 384 : index
    %5 = vector.load %arg7[%c0_7, %c384] : memref<4x512xbf16, #tpu.memory_space<vmem>>, vector<4x128xbf16>
    tpu.vector_store %arg7[%c0_7, %c384], %4 {strides = array<i32>} : memref<4x512xbf16, #tpu.memory_space<vmem>>, vector<4x128xbf16>,
    %c0_8 = arith.constant 0 : index
    %c21 = arith.constant 21 : index
    %6 = vector.load %arg7[%c0_8, %c21] : memref<4x512xbf16, #tpu.memory_space<vmem>>, vector<4x384xbf16>
    %c0_9 = arith.constant 0 : index
    %c0_10 = arith.constant 0 : index
    %7 = vector.load %arg8[%c0_9, %c0_10] : memref<72x384xbf16, #tpu.memory_space<vmem>>, vector<4x384xbf16>
    tpu.vector_store %arg8[%c0_9, %c0_10], %6 {strides = array<i32>} : memref<72x384xbf16, #tpu.memory_space<vmem>>, vector<4x384xbf16>,
    %c0_11 = arith.constant 0 : index
    %c22 = arith.constant 22 : index
    %8 = vector.load %arg7[%c0_11, %c22] : memref<4x512xbf16, #tpu.memory_space<vmem>>, vector<4x384xbf16>
    %c4 = arith.constant 4 : index
    %c0_12 = arith.constant 0 : index
    %9 = vector.load %arg8[%c4, %c0_12] : memref<72x384xbf16, #tpu.memory_space<vmem>>, vector<4x384xbf16>
    tpu.vector_store %arg8[%c4, %c0_12], %8 {strides = array<i32>} : memref<72x384xbf16, #tpu.memory_space<vmem>>, vector<4x384xbf16>,
    %c0_13 = arith.constant 0 : index
    %c23 = arith.constant 23 : index
    %10 = vector.load %arg7[%c0_13, %c23] : memref<4x512xbf16, #tpu.memory_space<vmem>>, vector<4x384xbf16>
    %c8 = arith.constant 8 : index
    %c0_14 = arith.constant 0 : index
    %11 = vector.load %arg8[%c8, %c0_14] : memref<72x384xbf16, #tpu.memory_space<vmem>>, vector<4x384xbf16>
    tpu.vector_store %arg8[%c8, %c0_14], %10 {strides = array<i32>} : memref<72x384xbf16, #tpu.memory_space<vmem>>, vector<4x384xbf16>,
    %c0_15 = arith.constant 0 : index
    %c41 = arith.constant 41 : index
    %12 = vector.load %arg7[%c0_15, %c41] : memref<4x512xbf16, #tpu.memory_space<vmem>>, vector<4x384xbf16>
    %c12 = arith.constant 12 : index
    %c0_16 = arith.constant 0 : index
    %13 = vector.load %arg8[%c12, %c0_16] : memref<72x384xbf16, #tpu.memory_space<vmem>>, vector<4x384xbf16>
    tpu.vector_store %arg8[%c12, %c0_16], %12 {strides = array<i32>} : memref<72x384xbf16, #tpu.memory_space<vmem>>, vector<4x384xbf16>,
    %c0_17 = arith.constant 0 : index
    %c42 = arith.constant 42 : index
    %14 = vector.load %arg7[%c0_17, %c42] : memref<4x512xbf16, #tpu.memory_space<vmem>>, vector<4x384xbf16>
    %c16 = arith.constant 16 : index
    %c0_18 = arith.constant 0 : index
    %15 = vector.load %arg8[%c16, %c0_18] : memref<72x384xbf16, #tpu.memory_space<vmem>>, vector<4x384xbf16>
    tpu.vector_store %arg8[%c16, %c0_18], %14 {strides = array<i32>} : memref<72x384xbf16, #tpu.memory_space<vmem>>, vector<4x384xbf16>,
    %c0_19 = arith.constant 0 : index
    %c43 = arith.constant 43 : index
    %16 = vector.load %arg7[%c0_19, %c43] : memref<4x512xbf16, #tpu.memory_space<vmem>>, vector<4x384xbf16>
    %c20 = arith.constant 20 : index
    %c0_20 = arith.constant 0 : index
    %17 = vector.load %arg8[%c20, %c0_20] : memref<72x384xbf16, #tpu.memory_space<vmem>>, vector<4x384xbf16>
    tpu.vector_store %arg8[%c20, %c0_20], %16 {strides = array<i32>} : memref<72x384xbf16, #tpu.memory_space<vmem>>, vector<4x384xbf16>,
    %c0_21 = arith.constant 0 : index
    %c61 = arith.constant 61 : index
    %18 = vector.load %arg7[%c0_21, %c61] : memref<4x512xbf16, #tpu.memory_space<vmem>>, vector<4x384xbf16>
    %c24 = arith.constant 24 : index
    %c0_22 = arith.constant 0 : index
    %19 = vector.load %arg8[%c24, %c0_22] : memref<72x384xbf16, #tpu.memory_space<vmem>>, vector<4x384xbf16>
    tpu.vector_store %arg8[%c24, %c0_22], %18 {strides = array<i32>} : memref<72x384xbf16, #tpu.memory_space<vmem>>, vector<4x384xbf16>,
    %c0_23 = arith.constant 0 : index
    %c62 = arith.constant 62 : index
    %20 = vector.load %arg7[%c0_23, %c62] : memref<4x512xbf16, #tpu.memory_space<vmem>>, vector<4x384xbf16>
    %c28 = arith.constant 28 : index
    %c0_24 = arith.constant 0 : index
    %21 = vector.load %arg8[%c28, %c0_24] : memref<72x384xbf16, #tpu.memory_space<vmem>>, vector<4x384xbf16>
    tpu.vector_store %arg8[%c28, %c0_24], %20 {strides = array<i32>} : memref<72x384xbf16, #tpu.memory_space<vmem>>, vector<4x384xbf16>,
    %c0_25 = arith.constant 0 : index
    %c63 = arith.constant 63 : index
    %22 = vector.load %arg7[%c0_25, %c63] : memref<4x512xbf16, #tpu.memory_space<vmem>>, vector<4x384xbf16>
    %c32 = arith.constant 32 : index
    %c0_26 = arith.constant 0 : index
    %23 = vector.load %arg8[%c32, %c0_26] : memref<72x384xbf16, #tpu.memory_space<vmem>>, vector<4x384xbf16>
    tpu.vector_store %arg8[%c32, %c0_26], %22 {strides = array<i32>} : memref<72x384xbf16, #tpu.memory_space<vmem>>, vector<4x384xbf16>,
    %c0_27 = arith.constant 0 : index
    %c0_28 = arith.constant 0 : index
    %24 = vector.load %arg7[%c0_27, %c0_28] : memref<4x512xbf16, #tpu.memory_space<vmem>>, vector<4x384xbf16>
    %c36 = arith.constant 36 : index
    %c0_29 = arith.constant 0 : index
    %25 = vector.load %arg8[%c36, %c0_29] : memref<72x384xbf16, #tpu.memory_space<vmem>>, vector<4x384xbf16>
    tpu.vector_store %arg8[%c36, %c0_29], %24 {strides = array<i32>} : memref<72x384xbf16, #tpu.memory_space<vmem>>, vector<4x384xbf16>,
    %c0_30 = arith.constant 0 : index
    %c2 = arith.constant 2 : index
    %26 = vector.load %arg7[%c0_30, %c2] : memref<4x512xbf16, #tpu.memory_space<vmem>>, vector<4x384xbf16>
    %c40 = arith.constant 40 : index
    %c0_31 = arith.constant 0 : index
    %27 = vector.load %arg8[%c40, %c0_31] : memref<72x384xbf16, #tpu.memory_space<vmem>>, vector<4x384xbf16>
    tpu.vector_store %arg8[%c40, %c0_31], %26 {strides = array<i32>} : memref<72x384xbf16, #tpu.memory_space<vmem>>, vector<4x384xbf16>,
    %c0_32 = arith.constant 0 : index
    %c4_33 = arith.constant 4 : index
    %28 = vector.load %arg7[%c0_32, %c4_33] : memref<4x512xbf16, #tpu.memory_space<vmem>>, vector<4x384xbf16>
    %c44 = arith.constant 44 : index
    %c0_34 = arith.constant 0 : index
    %29 = vector.load %arg8[%c44, %c0_34] : memref<72x384xbf16, #tpu.memory_space<vmem>>, vector<4x384xbf16>
    tpu.vector_store %arg8[%c44, %c0_34], %28 {strides = array<i32>} : memref<72x384xbf16, #tpu.memory_space<vmem>>, vector<4x384xbf16>,
    %c0_35 = arith.constant 0 : index
    %c40_36 = arith.constant 40 : index
    %30 = vector.load %arg7[%c0_35, %c40_36] : memref<4x512xbf16, #tpu.memory_space<vmem>>, vector<4x384xbf16>
    %c48 = arith.constant 48 : index
    %c0_37 = arith.constant 0 : index
    %31 = vector.load %arg8[%c48, %c0_37] : memref<72x384xbf16, #tpu.memory_space<vmem>>, vector<4x384xbf16>
    tpu.vector_store %arg8[%c48, %c0_37], %30 {strides = array<i32>} : memref<72x384xbf16, #tpu.memory_space<vmem>>, vector<4x384xbf16>,
    %c0_38 = arith.constant 0 : index
    %c42_39 = arith.constant 42 : index
    %32 = vector.load %arg7[%c0_38, %c42_39] : memref<4x512xbf16, #tpu.memory_space<vmem>>, vector<4x384xbf16>
    %c52 = arith.constant 52 : index
    %c0_40 = arith.constant 0 : index
    %33 = vector.load %arg8[%c52, %c0_40] : memref<72x384xbf16, #tpu.memory_space<vmem>>, vector<4x384xbf16>
    tpu.vector_store %arg8[%c52, %c0_40], %32 {strides = array<i32>} : memref<72x384xbf16, #tpu.memory_space<vmem>>, vector<4x384xbf16>,
    %c0_41 = arith.constant 0 : index
    %c44_42 = arith.constant 44 : index
    %34 = vector.load %arg7[%c0_41, %c44_42] : memref<4x512xbf16, #tpu.memory_space<vmem>>, vector<4x384xbf16>
    %c56 = arith.constant 56 : index
    %c0_43 = arith.constant 0 : index
    %35 = vector.load %arg8[%c56, %c0_43] : memref<72x384xbf16, #tpu.memory_space<vmem>>, vector<4x384xbf16>
    tpu.vector_store %arg8[%c56, %c0_43], %34 {strides = array<i32>} : memref<72x384xbf16, #tpu.memory_space<vmem>>, vector<4x384xbf16>,
    %c0_44 = arith.constant 0 : index
    %c80 = arith.constant 80 : index
    %36 = vector.load %arg7[%c0_44, %c80] : memref<4x512xbf16, #tpu.memory_space<vmem>>, vector<4x384xbf16>
    %c60 = arith.constant 60 : index
    %c0_45 = arith.constant 0 : index
    %37 = vector.load %arg8[%c60, %c0_45] : memref<72x384xbf16, #tpu.memory_space<vmem>>, vector<4x384xbf16>
    tpu.vector_store %arg8[%c60, %c0_45], %36 {strides = array<i32>} : memref<72x384xbf16, #tpu.memory_space<vmem>>, vector<4x384xbf16>,
    %c0_46 = arith.constant 0 : index
    %c82 = arith.constant 82 : index
    %38 = vector.load %arg7[%c0_46, %c82] : memref<4x512xbf16, #tpu.memory_space<vmem>>, vector<4x384xbf16>
    %c64 = arith.constant 64 : index
    %c0_47 = arith.constant 0 : index
    %39 = vector.load %arg8[%c64, %c0_47] : memref<72x384xbf16, #tpu.memory_space<vmem>>, vector<4x384xbf16>
    tpu.vector_store %arg8[%c64, %c0_47], %38 {strides = array<i32>} : memref<72x384xbf16, #tpu.memory_space<vmem>>, vector<4x384xbf16>,
    %c0_48 = arith.constant 0 : index
    %c84 = arith.constant 84 : index
    %40 = vector.load %arg7[%c0_48, %c84] : memref<4x512xbf16, #tpu.memory_space<vmem>>, vector<4x384xbf16>
    %c68 = arith.constant 68 : index
    %c0_49 = arith.constant 0 : index
    %41 = vector.load %arg8[%c68, %c0_49] : memref<72x384xbf16, #tpu.memory_space<vmem>>, vector<4x384xbf16>
    tpu.vector_store %arg8[%c68, %c0_49], %40 {strides = array<i32>} : memref<72x384xbf16, #tpu.memory_space<vmem>>, vector<4x384xbf16>,
    %c0_50 = arith.constant 0 : index
    %c0_51 = arith.constant 0 : index
    %42 = vector.load %arg4[%c0_50, %c0_51] : memref<8x72xbf16, #tpu.memory_space<vmem>>, vector<8x72xbf16>
    %c0_52 = arith.constant 0 : index
    %c0_53 = arith.constant 0 : index
    %43 = vector.load %arg8[%c0_52, %c0_53] : memref<72x384xbf16, #tpu.memory_space<vmem>>, vector<72x384xbf16>
    %cst = arith.constant dense<0.000000e+00> : vector<8x384xf32>
    %44 = tpu.matmul %42, %43, %cst {dimension_numbers = #tpu.dot_dimension_numbers<[1], [0], [0], [1], [0, 0, 1, 1], [], []>} : vector<8x72xbf16>, vector<72x384xbf16>, vector<8x384xf32> -> vector<8x384xf32>
    %c0_54 = arith.constant 0 : index
    %c0_55 = arith.constant 0 : index
    %45 = vector.load %arg5[%c0_54, %c0_55] : memref<8x1xf32, #tpu.memory_space<vmem>>, vector<8x1xf32>
    %46 = vector.broadcast %45 : vector<8x1xf32> to vector<8x384xf32>
    %47 = arith.addf %44, %46 : vector<8x384xf32>
    %48 = vector.shape_cast %47 : vector<8x384xf32> to vector<1x8x384xf32>
    %c0_56 = arith.constant 0 : index
    %c0_57 = arith.constant 0 : index
    %c0_58 = arith.constant 0 : index
    %49 = vector.load %arg6[%c0_56, %c0_57, %c0_58] : memref<1x8x384xf32, #tpu.memory_space<vmem>>, vector<1x8x384xf32>
    tpu.vector_store %arg6[%c0_56, %c0_57, %c0_58], %48 {strides = array<i32>} : memref<1x8x384xf32, #tpu.memory_space<vmem>>, vector<1x8x384xf32>,
    return
  }
  func.func @transform_0(%arg0: i32, %arg1: i32) -> (i32, i32, i32) {
    %c0_i32 = arith.constant 0 : i32
    %c0_i32_0 = arith.constant 0 : i32
    return %arg0, %c0_i32, %arg1 : i32, i32, i32
  }
  func.func @transform_1(%arg0: i32, %arg1: i32) -> (i32, i32, i32) {
    %c1_i32 = arith.constant 1 : i32
    %0 = arith.addi %arg1, %c1_i32 : i32
    %c3_i32 = arith.constant 3 : i32
    %1 = arith.muli %0, %c3_i32 : i32
    %c0_i32 = arith.constant 0 : i32
    %c0_i32_0 = arith.constant 0 : i32
    return %arg0, %c0_i32, %1 : i32, i32, i32
  }
  func.func @transform_2(%arg0: i32, %arg1: i32) -> (i32, i32) {
    %c0_i32 = arith.constant 0 : i32
    %c0_i32_0 = arith.constant 0 : i32
    %c0_i32_1 = arith.constant 0 : i32
    return %c0_i32, %c0_i32_0 : i32, i32
  }
  func.func @transform_3(%arg0: i32, %arg1: i32) -> (i32, i32) {
    %c0_i32 = arith.constant 0 : i32
    %c0_i32_0 = arith.constant 0 : i32
    %c0_i32_1 = arith.constant 0 : i32
    return %c0_i32, %c0_i32_0 : i32, i32
  }
  func.func @transform_4(%arg0: i32, %arg1: i32) -> (i32, i32, i32) {
    %c0_i32 = arith.constant 0 : i32
    %c0_i32_0 = arith.constant 0 : i32
    return %arg0, %c0_i32, %arg1 : i32, i32, i32
  }
}

</mosaic_0001>

<llo_original>
// kernel: tpu_custom_call.1
$region0: #{tpu_custom_call.1}
  #allocation0 [shape = 'u32[]', space=smem, size = 0x4, offset = 0x4, fixed_abs, tag = 'smem constant byte address 0x4 - core index']
  #allocation1 [shape = 'u32[72,128]{1,0:T(1,128)}', space=vmem, size = 0x9000, scoped, tag = 'internal scratch']
  #allocation2 [shape = 'bf16[4,512]{1,0:T(4,128)(2,1)}', space=vmem, size = 0x1000, scoped, tag = 'scratch operand']
  #allocation3 [shape = 'bf16[72,384]{1,0:T(8,128)(2,1)}', space=vmem, size = 0xd800, scoped, tag = 'scratch operand']
  %s0 = inlined_call_operand.hbm [shape: bf16[2,4,512], index: 0, kind: input, shape index: {}]
  %s1 = inlined_call_operand.hbm [shape: bf16[2,4,512], index: 1, kind: input, shape index: {}]
  %s2 = inlined_call_operand.vmem [shape: bf16[8,72], index: 2, kind: input, shape index: {}]
  %s3 = inlined_call_operand.vmem [shape: f32[8,1], index: 3, kind: input, shape index: {}]
  %s4 = inlined_call_operand.hbm [shape: f32[2,8,384], index: 4, kind: output, shape index: {}]
  %s5 = sld [smem:[#allocation0]]
  $region57: #{tpu_custom_call.1} parent=0
    _
  %s7 = ssub.s32 1, %s5
  %s8 = scalar_select 0, %s7, %s5
  $region1: #{tpu_custom_call.1} parent=0
    #allocation4 [shape = 'u8[6144]{0}', space=vmem, size = 0x1800, scoped, tag = 'input window, operand 0']
    #allocation5 [shape = 's32[2]{0}', space=sflag, size = 0x8, scoped, tag = 'scoped memory for tpu_custom_call.1']
    #allocation6 [shape = 's32[2]{0}', space=sflag, size = 0x8, scoped, tag = 'scoped memory for tpu_custom_call.1']
    #allocation7 [shape = 'u8[2048]{0}', space=vmem, size = 0x800, scoped, tag = 'input window, operand 1']
    #allocation8 [shape = 's32[2]{0}', space=sflag, size = 0x8, scoped, tag = 'scoped memory for tpu_custom_call.1']
    #allocation9 [shape = 'u8[24576]{0}', space=vmem, size = 0x6000, scoped, tag = 'output window, operand 0']
    %9 = vsyncpa [#allocation5], 0
    %s10 = scalar_lea.sflag [#allocation5], 1
    %11 = vsyncpa %s10, 0
    %12 = vsyncpa [#allocation8], 0
    %s13 = scalar_lea.sflag [#allocation8], 1
    %14 = vsyncpa %s13, 0
    %15 = vsyncpa [#allocation6], 0
    %s16 = scalar_lea.sflag [#allocation6], 1
    %17 = vsyncpa %s16, 0
    loop: start=0, step=1, limit=4
    $region2: #{tpu_custom_call.1} parent=1 // loop_pre_header
      _
    $region3: #{tpu_custom_call.1} parent=1 // loop_header
      %s19 = sphi 0, %s23
      %p20 = scmp.ge.s32.totalorder %s19, 4
      %s26 = sphi 0, %s38
      %s27 = sphi 0, %s34
      %s28 = sphi 0, %s26
      %s29 = sphi 0, %s27
      %s30 = sphi 0, %s28
      %s31 = sphi 0, %s29
      %s43 = sphi 0, %s45
      %s46 = sphi 0, %s43
      %s47 = sphi 0, %s46
      %s63 = sphi 0, %s47
      %s75 = sphi 0, %s77
      %s78 = sphi 0, %s75
      %s79 = sphi 0, %s78
      %s95 = sphi 0, %s79
      %s99 = sphi 0, %s99
      %s101 = sphi 0, %s99
      %s102 = sphi 0, %s101
      %s116 = sphi 0, %s102
      %s120 = sphi 0, %s120
      %s122 = sphi 0, %s120
      %s123 = sphi 0, %s122
      %s137 = sphi 0, %s123
      %s145 = sphi 0, %s147
      %s148 = sphi 0, %s145
      %s149 = sphi 0, %s148
      %s165 = sphi 0, %s149
    $region4: #{tpu_custom_call.1} parent=1 // loop_header_branch
      %22 = sbr.rel (%p20) target = $region8
    $region5: #{tpu_custom_call.1} parent=1 // loop_body
      %s24 = ssub.s32 %s19, 1
      %s25 = ssub.s32 %s19, 2
      %s32 = sadd.s32 1, %s27
      %p33 = scmp.ge.s32.totalorder %s32, 1
      %s34 = scalar_select %p33, 0, %s32
      %s35 = sadd.s32 1, %s26
      %s36 = scalar_select %p33, %s35, %s26
      %p37 = scmp.ge.s32.totalorder %s36, 2
      %s38 = scalar_select %p37, 0, %s36
      %s39 = ssub.s32 %s26, %s38
      %s40 = ssub.s32 %s27, %s34
      %s41 = sor.u32 %s39, %s40
      %p42 = scmp.eq.s32.totalorder %s41, 0
      %s44 = sadd.s32 %s43, 1
      %s45 = scalar_select %p42, %s43, %s44
      %p48 = pneg %p42
      %p49 = scmp.eq.s32.totalorder %s19, 1
      %p50 = por %p48, %p49
      %p51 = scmp.ne.s32.totalorder %s43, %s46
      %p52 = scmp.eq.s32.totalorder %s19, 0
      %p53 = por %p51, %p52
      %p54 = scmp.ne.s32.totalorder %s43, %s46
      %p55 = scmp.eq.s32.totalorder %s24, 1
      %p56 = por %p54, %p55
      %p57 = scmp.ne.s32.totalorder %s46, %s47
      %p58 = scmp.eq.s32.totalorder %s24, 0
      %p59 = por %p57, %p58
      %p60 = scmp.ne.s32.totalorder %s46, %s47
      %p61 = scmp.eq.s32.totalorder %s25, 1
      %p62 = por %p60, %p61
      %p64 = scmp.ne.s32.totalorder %s47, %s63
      %p65 = scmp.eq.s32.totalorder %s25, 0
      %p66 = por %p64, %p65
      %s67 = sadd.s32 %s27, 1
      %s68 = smul.u32 %s67, 3
      %s69 = sadd.s32 %s34, 1
      %s70 = smul.u32 %s69, 3
      %s71 = ssub.s32 %s26, %s38
      %s72 = ssub.s32 %s68, %s70
      %s73 = sor.u32 %s71, %s72
      %p74 = scmp.eq.s32.totalorder %s73, 0
      %s76 = sadd.s32 %s75, 1
      %s77 = scalar_select %p74, %s75, %s76
      %p80 = pneg %p74
      %p81 = scmp.eq.s32.totalorder %s19, 1
      %p82 = por %p80, %p81
      %p83 = scmp.ne.s32.totalorder %s75, %s78
      %p84 = scmp.eq.s32.totalorder %s19, 0
      %p85 = por %p83, %p84
      %p86 = scmp.ne.s32.totalorder %s75, %s78
      %p87 = scmp.eq.s32.totalorder %s24, 1
      %p88 = por %p86, %p87
      %p89 = scmp.ne.s32.totalorder %s78, %s79
      %p90 = scmp.eq.s32.totalorder %s24, 0
      %p91 = por %p89, %p90
      %p92 = scmp.ne.s32.totalorder %s78, %s79
      %p93 = scmp.eq.s32.totalorder %s25, 1
      %p94 = por %p92, %p93
      %p96 = scmp.ne.s32.totalorder %s79, %s95
      %p97 = scmp.eq.s32.totalorder %s25, 0
      %p98 = por %p96, %p97
      %s100 = sadd.s32 %s99, 1
      %p103 = scmp.eq.s32.totalorder %s19, 1
      %p104 = scmp.ne.s32.totalorder %s99, %s101
      %p105 = scmp.eq.s32.totalorder %s19, 0
      %p106 = por %p104, %p105
      %p107 = scmp.ne.s32.totalorder %s99, %s101
      %p108 = scmp.eq.s32.totalorder %s24, 1
      %p109 = por %p107, %p108
      %p110 = scmp.ne.s32.totalorder %s101, %s102
      %p111 = scmp.eq.s32.totalorder %s24, 0
      %p112 = por %p110, %p111
      %p113 = scmp.ne.s32.totalorder %s101, %s102
      %p114 = scmp.eq.s32.totalorder %s25, 1
      %p115 = por %p113, %p114
      %p117 = scmp.ne.s32.totalorder %s102, %s116
      %p118 = scmp.eq.s32.totalorder %s25, 0
      %p119 = por %p117, %p118
      %s121 = sadd.s32 %s120, 1
      %p124 = scmp.eq.s32.totalorder %s19, 1
      %p125 = scmp.ne.s32.totalorder %s120, %s122
      %p126 = scmp.eq.s32.totalorder %s19, 0
      %p127 = por %p125, %p126
      %p128 = scmp.ne.s32.totalorder %s120, %s122
      %p129 = scmp.eq.s32.totalorder %s24, 1
      %p130 = por %p128, %p129
      %p131 = scmp.ne.s32.totalorder %s122, %s123
      %p132 = scmp.eq.s32.totalorder %s24, 0
      %p133 = por %p131, %p132
      %p134 = scmp.ne.s32.totalorder %s122, %s123
      %p135 = scmp.eq.s32.totalorder %s25, 1
      %p136 = por %p134, %p135
      %p138 = scmp.ne.s32.totalorder %s123, %s137
      %p139 = scmp.eq.s32.totalorder %s25, 0
      %p140 = por %p138, %p139
      %s141 = ssub.s32 %s26, %s38
      %s142 = ssub.s32 %s27, %s34
      %s143 = sor.u32 %s141, %s142
      %p144 = scmp.eq.s32.totalorder %s143, 0
      %s146 = sadd.s32 %s145, 1
      %s147 = scalar_select %p144, %s145, %s146
      %p150 = pneg %p144
      %p151 = scmp.eq.s32.totalorder %s19, 1
      %p152 = por %p150, %p151
      %p153 = scmp.ne.s32.totalorder %s145, %s148
      %p154 = scmp.eq.s32.totalorder %s19, 0
      %p155 = por %p153, %p154
      %p156 = scmp.ne.s32.totalorder %s145, %s148
      %p157 = scmp.eq.s32.totalorder %s24, 1
      %p158 = por %p156, %p157
      %p159 = scmp.ne.s32.totalorder %s148, %s149
      %p160 = scmp.eq.s32.totalorder %s24, 0
      %p161 = por %p159, %p160
      %p162 = scmp.ne.s32.totalorder %s148, %s149
      %p163 = scmp.eq.s32.totalorder %s25, 1
      %p164 = por %p162, %p163
      %p166 = scmp.ne.s32.totalorder %s149, %s165
      %p167 = scmp.eq.s32.totalorder %s25, 0
      %p168 = por %p166, %p167
      %p169 = scmp.le.s32.totalorder 1, %s19
      %p170 = scmp.lt.s32.totalorder %s19, 3
      %p171 = pnand %p169, %p170
      %p172 = pneg %p171
      // Predicated region
      $region9: #{tpu_custom_call.1} parent=5 // pred_check
        _
      $region10: #{tpu_custom_call.1} parent=5 // pred_check_branch
        %174 = sbr.rel (%p171) target = $region12
      $region11: #{tpu_custom_call.1} parent=5 // pred_region
        %s175 = ssub.s32 %s19, 1
        // Predicated region
        $region13: #{tpu_custom_call.1} parent=11 // pred_check
          %p176 = pneg %p112
        $region14: #{tpu_custom_call.1} parent=11 // pred_check_branch
          %178 = sbr.rel (%p176) target = $region16
        $region15: #{tpu_custom_call.1} parent=11 // pred_region
          _
        $region16: #{tpu_custom_call.1} parent=11 // pred_fallthru
          _
        // Predicated region
        $region17: #{tpu_custom_call.1} parent=11 // pred_check
          %p179 = pneg %p133
        $region18: #{tpu_custom_call.1} parent=11 // pred_check_branch
          %181 = sbr.rel (%p179) target = $region20
        $region19: #{tpu_custom_call.1} parent=11 // pred_region
          _
        $region20: #{tpu_custom_call.1} parent=11 // pred_fallthru
          _
      $region12: #{tpu_custom_call.1} parent=5 // pred_fallthru
        _
      %p182 = scmp.lt.s32.totalorder %s19, 2
      // Predicated region
      $region21: #{tpu_custom_call.1} parent=5 // pred_check
        %p183 = pneg %p182
      $region22: #{tpu_custom_call.1} parent=5 // pred_check_branch
        %185 = sbr.rel (%p183) target = $region24
      $region23: #{tpu_custom_call.1} parent=5 // pred_region
        // Predicated region
        $region25: #{tpu_custom_call.1} parent=23 // pred_check
          %p186 = pneg %p53
        $region26: #{tpu_custom_call.1} parent=23 // pred_check_branch
          %188 = sbr.rel (%p186) target = $region28
        $region27: #{tpu_custom_call.1} parent=23 // pred_region
          %s189 = sand.u32 %s43, 1
          %s190 = scalar_lea.sflag [#allocation5], %s189
          %s191 = sand.u32 %s43, 1
          %s192 = smul.addr %s191, 6
          %s193 = scalar_lea.vmem [#allocation4], %s192
          %s194 = smul.u32 3, %s27
          %s195 = ssub.s32 4, %s194
          %p196 = scmp.lt.s32.totalorder %s195, 3
          %s197 = scalar_select %p196, %s195, 3
          %s198 = smul.u32 2, %s197
          %s199 = ssub.s32 6, %s198
          %s200 = sshll.u32 %s199, 4
          %201 = vsyncadd %s190, %s200
          %p202 = scmp.ne.s32.totalorder 0, %s198
          %s203 = smul.addr %s26, 4
          %s204 = sadd.s32 %s194, %s203
          %s205 = smul.addr %s204, 2
          %s206 = scalar_lea.hbm %s0, %s205
          %s207 = smul.u32 %s197, 2
          %s208 = sshll.u32 %s207, 4
          %s209 = sshll.u32 %s206, 4
          %s210 = int_to_ptr.hbm [resolvable:$true] %s209
          %s211 = sshll.u32 %s193, 4
          %s212 = int_to_ptr.vmem [resolvable:$true] %s211
          %214 = dma.hbm_to_vmem [thread:$0]  (%p202), %s210, %s208, %s212, %s190
        $region28: #{tpu_custom_call.1} parent=23 // pred_fallthru
          _
        // Predicated region
        $region29: #{tpu_custom_call.1} parent=23 // pred_check
          %p215 = pneg %p85
        $region30: #{tpu_custom_call.1} parent=23 // pred_check_branch
          %217 = sbr.rel (%p215) target = $region32
        $region31: #{tpu_custom_call.1} parent=23 // pred_region
          %s218 = sand.u32 %s75, 1
          %s219 = scalar_lea.sflag [#allocation8], %s218
          %s220 = sand.u32 %s75, 1
          %s221 = smul.addr %s220, 2
          %s222 = scalar_lea.vmem [#allocation7], %s221
          %s223 = sadd.s32 %s27, 1
          %s224 = smul.u32 %s223, 3
          %226 = vsyncadd %s219, 0
          %s227 = smul.addr %s26, 4
          %s228 = sadd.s32 %s224, %s227
          %s229 = smul.addr %s228, 2
          %s230 = scalar_lea.hbm %s1, %s229
          %s232 = sshll.u32 %s230, 4
          %s233 = int_to_ptr.hbm [resolvable:$true] %s232
          %s234 = sshll.u32 %s222, 4
          %s235 = int_to_ptr.vmem [resolvable:$true] %s234
          %237 = dma.hbm_to_vmem [thread:$0]  %s233, 32, %s235, %s219
        $region32: #{tpu_custom_call.1} parent=23 // pred_fallthru
          _
      $region24: #{tpu_custom_call.1} parent=5 // pred_fallthru
        _
      %p238 = scmp.le.s32.totalorder 1, %s19
      %p239 = scmp.lt.s32.totalorder %s19, 3
      %p240 = pnand %p238, %p239
      %p241 = pneg %p240
      // Predicated region
      $region33: #{tpu_custom_call.1} parent=5 // pred_check
        _
      $region34: #{tpu_custom_call.1} parent=5 // pred_check_branch
        %243 = sbr.rel (%p240) target = $region36
      $region35: #{tpu_custom_call.1} parent=5 // pred_region
        %s244 = ssub.s32 %s19, 1
        %s245 = sand.u32 %s46, 1
        %s246 = scalar_lea.sflag [#allocation5], %s245
        %s247 = sand.u32 %s46, 1
        %s248 = smul.addr %s247, 6
        %s249 = scalar_lea.vmem [#allocation4], %s248
        // Predicated region
        $region37: #{tpu_custom_call.1} parent=35 // pred_check
          %p250 = pneg %p59
        $region38: #{tpu_custom_call.1} parent=35 // pred_check_branch
          %252 = sbr.rel (%p250) target = $region40
        $region39: #{tpu_custom_call.1} parent=35 // pred_region
          %254 = dma.done %s246, 96
        $region40: #{tpu_custom_call.1} parent=35 // pred_fallthru
          _
        %s255 = sand.u32 %s78, 1
        %s256 = scalar_lea.sflag [#allocation8], %s255
        %s257 = sand.u32 %s78, 1
        %s258 = smul.addr %s257, 2
        %s259 = scalar_lea.vmem [#allocation7], %s258
        // Predicated region
        $region41: #{tpu_custom_call.1} parent=35 // pred_check
          %p260 = pneg %p91
        $region42: #{tpu_custom_call.1} parent=35 // pred_check_branch
          %262 = sbr.rel (%p260) target = $region44
        $region43: #{tpu_custom_call.1} parent=35 // pred_region
          %264 = dma.done %s256, 32
        $region44: #{tpu_custom_call.1} parent=35 // pred_fallthru
          _
        %s265 = sand.u32 %s46, 1
        %s266 = scalar_lea.sflag [#allocation5], %s265
        %s267 = sand.u32 %s46, 1
        %s268 = smul.addr %s267, 6
        %s269 = scalar_lea.vmem [#allocation4], %s268
        %p270 = pneg %p59
        %p271 = pneg %p56
        %s272 = sand.u32 %s78, 1
        %s273 = scalar_lea.sflag [#allocation8], %s272
        %s274 = sand.u32 %s78, 1
        %s275 = smul.addr %s274, 2
        %s276 = scalar_lea.vmem [#allocation7], %s275
        %p277 = pneg %p91
        %p278 = pneg %p88
        %p279 = pneg %p112
        %p280 = pneg %p109
        %p281 = pneg %p133
        %p282 = pneg %p130
        %p283 = pneg %p161
        %p284 = pneg %p158
        %s285 = sand.u32 %s148, 1
        %s286 = scalar_lea.sflag [#allocation6], %s285
        %s287 = sand.u32 %s148, 1
        %s288 = smul.addr %s287, 24
        %s289 = scalar_lea.vmem [#allocation9], %s288
        %s290 = smul.u32 3, %s29
        %s291 = ssub.s32 4, %s290
        %p292 = scmp.lt.s32.totalorder %s291, 3
        %s293 = scalar_select %p292, %s291, 3
        %s294 = smul.u32 2, %s293
        %s295 = sadd.s32 %s29, 1
        %s296 = smul.u32 %s295, 3
        %s297 = smul.u32 3, %s29
        %v299 = vld [vmem:[%s249] sm:$0x3f]
        %300 = vst [vmem:[#allocation2] sm:$0x3f] %v299
        %v301 = vld [vmem:[%s259] sm:$0x3]
        %302 = vst [vmem:[#allocation2 + $0x6] sm:$0x3] %v301
        %v303 = vld [vmem:[#allocation2] sm:$0xff]
        %305 = vst [vmem:[#allocation1] ss:$2 sm:$0xff] %v303
        %v306 = vld.sshfl [vmem:[#allocation1] sm:$0xff pattern:$0x75643120]
        %v308 = vld.sshfl [vmem:[#allocation1 + $0x8] sm:$0xff pattern:$0x75643120]
        %310 = vrot.lane.b32.xlu0 %v306, 107
        %v311 = vpop.permute.xlu0 %310
        %312 = vrot.lane.b32.xlu0 %v308, 107
        %v313 = vpop.permute.xlu0 %312
        %v314 = vrot.slane %v311, 4
        %v315 = vrot.slane %v313, 4
        %vm316 = vcmask 1043456
        %v317 = vsel %vm316, %v314, %v315
        %vm318 = vcmask 875520
        %v319 = vsel %vm318, %v311, %v317
        %v320 = vsel %vm318, %v313, %v315
        %323 = vst [vmem:[#allocation3] sm:$0x33] %v319
        %324 = vst [vmem:[#allocation3 + $0x8] sm:$0x3] %v320
        %v325 = vld [vmem:[#allocation2] sm:$0xff]
        %s327 = scalar_lea.vmem [#allocation1], 1
        %328 = vst [vmem:[%s327] ss:$2 sm:$0xff] %v325
        %v329 = vld.sshfl [vmem:[#allocation1] sm:$0xff pattern:$0x75643120]
        %v331 = vld.sshfl [vmem:[#allocation1 + $0x8] sm:$0xff pattern:$0x75643120]
        %333 = vrot.lane.b32.xlu0 %v329, 106
        %v334 = vpop.permute.xlu0 %333
        %335 = vrot.lane.b32.xlu0 %v331, 106
        %v336 = vpop.permute.xlu0 %335
        %v337 = vrot.slane %v334, 4
        %v338 = vrot.slane %v336, 4
        %v339 = vsel %vm316, %v337, %v338
        %vm340 = vcmask 867328
        %v341 = vsel %vm340, %v334, %v339
        %v342 = vsel %vm340, %v336, %v338
        %345 = vst [vmem:[#allocation3] sm:$0xcc] %v341
        %346 = vst [vmem:[#allocation3 + $0x8] sm:$0xc] %v342
        %v347 = vld [vmem:[#allocation2] sm:$0xff]
        %349 = vst [vmem:[#allocation1] ss:$2 sm:$0xff] %v347
        %v350 = vld.sshfl [vmem:[#allocation1] sm:$0xff pattern:$0x75643120]
        %v352 = vld.sshfl [vmem:[#allocation1 + $0x8] sm:$0xff pattern:$0x75643120]
        %354 = vrot.lane.b32.xlu0 %v350, 105
        %v355 = vpop.permute.xlu0 %354
        %356 = vrot.lane.b32.xlu0 %v352, 105
        %v357 = vpop.permute.xlu0 %356
        %v358 = vrot.slane %v355, 4
        %v359 = vrot.slane %v357, 4
        %v360 = vsel %vm316, %v358, %v359
        %vm361 = vcmask 859136
        %v362 = vsel %vm361, %v355, %v360
        %v363 = vsel %vm361, %v357, %v359
        %366 = vst [vmem:[#allocation3 + $0xc] sm:$0x33] %v362
        %367 = vst [vmem:[#allocation3 + $0x14] sm:$0x3] %v363
        %v368 = vld [vmem:[#allocation2] sm:$0xff]
        %s370 = scalar_lea.vmem [#allocation1], 1
        %371 = vst [vmem:[%s370] ss:$2 sm:$0xff] %v368
        %v372 = vld.sshfl [vmem:[#allocation1] sm:$0xff pattern:$0x75643120]
        %v374 = vld.sshfl [vmem:[#allocation1 + $0x8] sm:$0xff pattern:$0x75643120]
        %376 = vrot.lane.b32.xlu0 %v372, 87
        %v377 = vpop.permute.xlu0 %376
        %378 = vrot.lane.b32.xlu0 %v374, 87
        %v379 = vpop.permute.xlu0 %378
        %v380 = vrot.slane %v377, 4
        %v381 = vrot.slane %v379, 4
        %v382 = vsel %vm316, %v380, %v381
        %vm383 = vcmask 711680
        %v384 = vsel %vm383, %v377, %v382
        %v385 = vsel %vm383, %v379, %v381
        %388 = vst [vmem:[#allocation3 + $0xc] sm:$0xcc] %v384
        %389 = vst [vmem:[#allocation3 + $0x14] sm:$0xc] %v385
        %v390 = vld [vmem:[#allocation2] sm:$0xff]
        %392 = vst [vmem:[#allocation1] ss:$2 sm:$0xff] %v390
        %v393 = vld.sshfl [vmem:[#allocation1] sm:$0xff pattern:$0x75643120]
        %v395 = vld.sshfl [vmem:[#allocation1 + $0x8] sm:$0xff pattern:$0x75643120]
        %397 = vrot.lane.b32.xlu0 %v393, 86
        %v398 = vpop.permute.xlu0 %397
        %399 = vrot.lane.b32.xlu0 %v395, 86
        %v400 = vpop.permute.xlu0 %399
        %v401 = vrot.slane %v398, 4
        %v402 = vrot.slane %v400, 4
        %v403 = vsel %vm316, %v401, %v402
        %vm404 = vcmask 703488
        %v405 = vsel %vm404, %v398, %v403
        %v406 = vsel %vm404, %v400, %v402
        %409 = vst [vmem:[#allocation3 + $0x18] sm:$0x33] %v405
        %410 = vst [vmem:[#allocation3 + $0x20] sm:$0x3] %v406
        %v411 = vld [vmem:[#allocation2] sm:$0xff]
        %s413 = scalar_lea.vmem [#allocation1], 1
        %414 = vst [vmem:[%s413] ss:$2 sm:$0xff] %v411
        %v415 = vld.sshfl [vmem:[#allocation1] sm:$0xff pattern:$0x75643120]
        %v417 = vld.sshfl [vmem:[#allocation1 + $0x8] sm:$0xff pattern:$0x75643120]
        %419 = vrot.lane.b32.xlu0 %v415, 85
        %v420 = vpop.permute.xlu0 %419
        %421 = vrot.lane.b32.xlu0 %v417, 85
        %v422 = vpop.permute.xlu0 %421
        %v423 = vrot.slane %v420, 4
        %v424 = vrot.slane %v422, 4
        %v425 = vsel %vm316, %v423, %v424
        %vm426 = vcmask 695296
        %v427 = vsel %vm426, %v420, %v425
        %v428 = vsel %vm426, %v422, %v424
        %431 = vst [vmem:[#allocation3 + $0x18] sm:$0xcc] %v427
        %432 = vst [vmem:[#allocation3 + $0x20] sm:$0xc] %v428
        %v433 = vld [vmem:[#allocation2] sm:$0xff]
        %435 = vst [vmem:[#allocation1] ss:$2 sm:$0xff] %v433
        %v436 = vld.sshfl [vmem:[#allocation1] sm:$0xff pattern:$0x75643120]
        %v438 = vld.sshfl [vmem:[#allocation1 + $0x8] sm:$0xff pattern:$0x75643120]
        %440 = vrot.lane.b32.xlu0 %v436, 67
        %v441 = vpop.permute.xlu0 %440
        %442 = vrot.lane.b32.xlu0 %v438, 67
        %v443 = vpop.permute.xlu0 %442
        %v444 = vrot.slane %v441, 4
        %v445 = vrot.slane %v443, 4
        %v446 = vsel %vm316, %v444, %v445
        %vm447 = vcmask 547840
        %v448 = vsel %vm447, %v441, %v446
        %v449 = vsel %vm447, %v443, %v445
        %452 = vst [vmem:[#allocation3 + $0x24] sm:$0x33] %v448
        %453 = vst [vmem:[#allocation3 + $0x2c] sm:$0x3] %v449
        %v454 = vld [vmem:[#allocation2] sm:$0xff]
        %s456 = scalar_lea.vmem [#allocation1], 1
        %457 = vst [vmem:[%s456] ss:$2 sm:$0xff] %v454
        %v458 = vld.sshfl [vmem:[#allocation1] sm:$0xff pattern:$0x75643120]
        %v460 = vld.sshfl [vmem:[#allocation1 + $0x8] sm:$0xff pattern:$0x75643120]
        %462 = vrot.lane.b32.xlu0 %v458, 66
        %v463 = vpop.permute.xlu0 %462
        %464 = vrot.lane.b32.xlu0 %v460, 66
        %v465 = vpop.permute.xlu0 %464
        %v466 = vrot.slane %v463, 4
        %v467 = vrot.slane %v465, 4
        %v468 = vsel %vm316, %v466, %v467
        %vm469 = vcmask 539648
        %v470 = vsel %vm469, %v463, %v468
        %v471 = vsel %vm469, %v465, %v467
        %474 = vst [vmem:[#allocation3 + $0x24] sm:$0xcc] %v470
        %475 = vst [vmem:[#allocation3 + $0x2c] sm:$0xc] %v471
        %v476 = vld [vmem:[#allocation2] sm:$0xff]
        %478 = vst [vmem:[#allocation1] ss:$2 sm:$0xff] %v476
        %v479 = vld.sshfl [vmem:[#allocation1] sm:$0xff pattern:$0x75643120]
        %v481 = vld.sshfl [vmem:[#allocation1 + $0x8] sm:$0xff pattern:$0x75643120]
        %483 = vrot.lane.b32.xlu0 %v479, 65
        %v484 = vpop.permute.xlu0 %483
        %485 = vrot.lane.b32.xlu0 %v481, 65
        %v486 = vpop.permute.xlu0 %485
        %v487 = vrot.slane %v484, 4
        %v488 = vrot.slane %v486, 4
        %v489 = vsel %vm316, %v487, %v488
        %vm490 = vcmask 531456
        %v491 = vsel %vm490, %v484, %v489
        %v492 = vsel %vm490, %v486, %v488
        %495 = vst [vmem:[#allocation3 + $0x30] sm:$0x33] %v491
        %496 = vst [vmem:[#allocation3 + $0x38] sm:$0x3] %v492
        %v497 = vld [vmem:[#allocation2] sm:$0x3f]
        %s499 = scalar_lea.vmem [#allocation1], 1
        %500 = vst [vmem:[%s499] ss:$2 sm:$0xff] %v497
        %v501 = vld.sshfl [vmem:[#allocation1] sm:$0xff pattern:$0x75643120]
        %v502 = vld.sshfl [vmem:[#allocation1 + $0x8] sm:$0xff pattern:$0x75643120]
        %505 = vst [vmem:[#allocation3 + $0x30] sm:$0xcc] %v501
        %506 = vst [vmem:[#allocation3 + $0x38] sm:$0xc] %v502
        %v507 = vld [vmem:[#allocation2] sm:$0xff]
        %509 = vst [vmem:[#allocation1] ss:$2 sm:$0xff] %v507
        %v510 = vld.sshfl [vmem:[#allocation1] sm:$0xff pattern:$0x75643120]
        %v512 = vld.sshfl [vmem:[#allocation1 + $0x8] sm:$0xff pattern:$0x75643120]
        %514 = vrot.lane.b32.xlu0 %v510, 126
        %v515 = vpop.permute.xlu0 %514
        %516 = vrot.lane.b32.xlu0 %v512, 126
        %v517 = vpop.permute.xlu0 %516
        %v518 = vrot.slane %v515, 4
        %v519 = vrot.slane %v517, 4
        %v520 = vsel %vm316, %v518, %v519
        %vm521 = vcmask 1031168
        %v522 = vsel %vm521, %v515, %v520
        %v523 = vsel %vm521, %v517, %v519
        %526 = vst [vmem:[#allocation3 + $0x3c] sm:$0x33] %v522
        %527 = vst [vmem:[#allocation3 + $0x44] sm:$0x3] %v523
        %v528 = vld [vmem:[#allocation2] sm:$0xff]
        %s530 = scalar_lea.vmem [#allocation1], 1
        %531 = vst [vmem:[%s530] ss:$2 sm:$0xff] %v528
        %v532 = vld.sshfl [vmem:[#allocation1] sm:$0xff pattern:$0x75643120]
        %v534 = vld.sshfl [vmem:[#allocation1 + $0x8] sm:$0xff pattern:$0x75643120]
        %536 = vrot.lane.b32.xlu0 %v532, 124
        %v537 = vpop.permute.xlu0 %536
        %538 = vrot.lane.b32.xlu0 %v534, 124
        %v539 = vpop.permute.xlu0 %538
        %v540 = vrot.slane %v537, 4
        %v541 = vrot.slane %v539, 4
        %v542 = vsel %vm316, %v540, %v541
        %vm543 = vcmask 1014784
        %v544 = vsel %vm543, %v537, %v542
        %v545 = vsel %vm543, %v539, %v541
        %548 = vst [vmem:[#allocation3 + $0x3c] sm:$0xcc] %v544
        %549 = vst [vmem:[#allocation3 + $0x44] sm:$0xc] %v545
        %v550 = vld [vmem:[#allocation2] sm:$0xff]
        %552 = vst [vmem:[#allocation1] ss:$2 sm:$0xff] %v550
        %v553 = vld.sshfl [vmem:[#allocation1] sm:$0xff pattern:$0x75643120]
        %v555 = vld.sshfl [vmem:[#allocation1 + $0x8] sm:$0xff pattern:$0x75643120]
        %557 = vrot.lane.b32.xlu0 %v553, 88
        %v558 = vpop.permute.xlu0 %557
        %559 = vrot.lane.b32.xlu0 %v555, 88
        %v560 = vpop.permute.xlu0 %559
        %v561 = vrot.slane %v558, 4
        %v562 = vrot.slane %v560, 4
        %v563 = vsel %vm316, %v561, %v562
        %vm564 = vcmask 719872
        %v565 = vsel %vm564, %v558, %v563
        %v566 = vsel %vm564, %v560, %v562
        %569 = vst [vmem:[#allocation3 + $0x48] sm:$0x33] %v565
        %570 = vst [vmem:[#allocation3 + $0x50] sm:$0x3] %v566
        %v571 = vld [vmem:[#allocation2] sm:$0xff]
        %s573 = scalar_lea.vmem [#allocation1], 1
        %574 = vst [vmem:[%s573] ss:$2 sm:$0xff] %v571
        %v575 = vld.sshfl [vmem:[#allocation1] sm:$0xff pattern:$0x75643120]
        %v577 = vld.sshfl [vmem:[#allocation1 + $0x8] sm:$0xff pattern:$0x75643120]
        %579 = vrot.lane.b32.xlu0 %v575, 86
        %v580 = vpop.permute.xlu0 %579
        %581 = vrot.lane.b32.xlu0 %v577, 86
        %v582 = vpop.permute.xlu0 %581
        %v583 = vrot.slane %v580, 4
        %v584 = vrot.slane %v582, 4
        %v585 = vsel %vm316, %v583, %v584
        %v586 = vsel %vm404, %v580, %v585
        %v587 = vsel %vm404, %v582, %v584
        %590 = vst [vmem:[#allocation3 + $0x48] sm:$0xcc] %v586
        %591 = vst [vmem:[#allocation3 + $0x50] sm:$0xc] %v587
        %v592 = vld [vmem:[#allocation2] sm:$0xff]
        %594 = vst [vmem:[#allocation1] ss:$2 sm:$0xff] %v592
        %v595 = vld.sshfl [vmem:[#allocation1] sm:$0xff pattern:$0x75643120]
        %v597 = vld.sshfl [vmem:[#allocation1 + $0x8] sm:$0xff pattern:$0x75643120]
        %599 = vrot.lane.b32.xlu0 %v595, 84
        %v600 = vpop.permute.xlu0 %599
        %601 = vrot.lane.b32.xlu0 %v597, 84
        %v602 = vpop.permute.xlu0 %601
        %v603 = vrot.slane %v600, 4
        %v604 = vrot.slane %v602, 4
        %v605 = vsel %vm316, %v603, %v604
        %vm606 = vcmask 687104
        %v607 = vsel %vm606, %v600, %v605
        %v608 = vsel %vm606, %v602, %v604
        %611 = vst [vmem:[#allocation3 + $0x54] sm:$0x33] %v607
        %612 = vst [vmem:[#allocation3 + $0x5c] sm:$0x3] %v608
        %v613 = vld [vmem:[#allocation2] sm:$0xff]
        %s615 = scalar_lea.vmem [#allocation1], 1
        %616 = vst [vmem:[%s615] ss:$2 sm:$0xff] %v613
        %v617 = vld.sshfl [vmem:[#allocation1] sm:$0xff pattern:$0x75643120]
        %v619 = vld.sshfl [vmem:[#allocation1 + $0x8] sm:$0xff pattern:$0x75643120]
        %621 = vrot.lane.b32.xlu0 %v617, 48
        %v622 = vpop.permute.xlu0 %621
        %623 = vrot.lane.b32.xlu0 %v619, 48
        %v624 = vpop.permute.xlu0 %623
        %v625 = vrot.slane %v622, 4
        %v626 = vrot.slane %v624, 4
        %v627 = vsel %vm316, %v625, %v626
        %vm628 = vcmask 392192
        %v629 = vsel %vm628, %v622, %v627
        %v630 = vsel %vm628, %v624, %v626
        %633 = vst [vmem:[#allocation3 + $0x54] sm:$0xcc] %v629
        %634 = vst [vmem:[#allocation3 + $0x5c] sm:$0xc] %v630
        %v635 = vld [vmem:[#allocation2] sm:$0xff]
        %637 = vst [vmem:[#allocation1] ss:$2 sm:$0xff] %v635
        %v638 = vld.sshfl [vmem:[#allocation1] sm:$0xff pattern:$0x75643120]
        %v640 = vld.sshfl [vmem:[#allocation1 + $0x8] sm:$0xff pattern:$0x75643120]
        %642 = vrot.lane.b32.xlu0 %v638, 46
        %v643 = vpop.permute.xlu0 %642
        %644 = vrot.lane.b32.xlu0 %v640, 46
        %v645 = vpop.permute.xlu0 %644
        %v646 = vrot.slane %v643, 4
        %v647 = vrot.slane %v645, 4
        %v648 = vsel %vm316, %v646, %v647
        %vm649 = vcmask 375808
        %v650 = vsel %vm649, %v643, %v648
        %v651 = vsel %vm649, %v645, %v647
        %654 = vst [vmem:[#allocation3 + $0x60] sm:$0x33] %v650
        %655 = vst [vmem:[#allocation3 + $0x68] sm:$0x3] %v651
        %v656 = vld [vmem:[#allocation2] sm:$0xff]
        %s658 = scalar_lea.vmem [#allocation1], 1
        %659 = vst [vmem:[%s658] ss:$2 sm:$0xff] %v656
        %v660 = vld.sshfl [vmem:[#allocation1] sm:$0xff pattern:$0x75643120]
        %v662 = vld.sshfl [vmem:[#allocation1 + $0x8] sm:$0xff pattern:$0x75643120]
        %664 = vrot.lane.b32.xlu0 %v660, 44
        %v665 = vpop.permute.xlu0 %664
        %666 = vrot.lane.b32.xlu0 %v662, 44
        %v667 = vpop.permute.xlu0 %666
        %v668 = vrot.slane %v665, 4
        %v669 = vrot.slane %v667, 4
        %v670 = vsel %vm316, %v668, %v669
        %vm671 = vcmask 359424
        %v672 = vsel %vm671, %v665, %v670
        %v673 = vsel %vm671, %v667, %v669
        %676 = vst [vmem:[#allocation3 + $0x60] sm:$0xcc] %v672
        %677 = vst [vmem:[#allocation3 + $0x68] sm:$0xc] %v673
        %v678 = vld [vmem:[%s2] sm:$0xf]
        %v679 = vld [vmem:[#allocation3] sm:$0xff]
        %v680 = vld [vmem:[#allocation3 + $0x8] sm:$0xf]
        %v681 = vld [vmem:[#allocation3 + $0xc] sm:$0xff]
        %v682 = vld [vmem:[#allocation3 + $0x14] sm:$0xf]
        %v683 = vld [vmem:[#allocation3 + $0x18] sm:$0xff]
        %v684 = vld [vmem:[#allocation3 + $0x20] sm:$0xf]
        %v685 = vld [vmem:[#allocation3 + $0x24] sm:$0xff]
        %v686 = vld [vmem:[#allocation3 + $0x2c] sm:$0xf]
        %v687 = vld [vmem:[#allocation3 + $0x30] sm:$0xff]
        %v688 = vld [vmem:[#allocation3 + $0x38] sm:$0xf]
        %v689 = vld [vmem:[#allocation3 + $0x3c] sm:$0xff]
        %v690 = vld [vmem:[#allocation3 + $0x44] sm:$0xf]
        %v691 = vld [vmem:[#allocation3 + $0x48] sm:$0xff]
        %v692 = vld [vmem:[#allocation3 + $0x50] sm:$0xf]
        %v693 = vld [vmem:[#allocation3 + $0x54] sm:$0xff]
        %v694 = vld [vmem:[#allocation3 + $0x5c] sm:$0xf]
        %v695 = vld [vmem:[#allocation3 + $0x60] sm:$0xff]
        %v696 = vld [vmem:[#allocation3 + $0x68] sm:$0xf]
        %v697 = vld [vmem:[%s3] sm:$0xff]
        %699 = vset.pattern.permute.xlu0 0
        %700 = vperm.xlu0 %699, %v697
        %v701 = vpop.permute.xlu0 %700
        %v721 = vunpack.c.l.b16 %v679
        %v722 = vunpack.c.h.b16 %v679
        %v723 = vunpack.c.l.b16 %v680
        %v724 = vunpack.c.l.b16 %v681
        %v725 = vunpack.c.h.b16 %v681
        %v726 = vunpack.c.l.b16 %v682
        %v727 = vunpack.c.l.b16 %v683
        %v728 = vunpack.c.h.b16 %v683
        %v729 = vunpack.c.l.b16 %v684
        %v730 = vunpack.c.l.b16 %v685
        %v731 = vunpack.c.h.b16 %v685
        %v732 = vunpack.c.l.b16 %v686
        %v733 = vunpack.c.l.b16 %v687
        %v734 = vunpack.c.h.b16 %v687
        %v735 = vunpack.c.l.b16 %v688
        %v736 = vunpack.c.l.b16 %v689
        %v737 = vunpack.c.h.b16 %v689
        %v738 = vunpack.c.l.b16 %v690
        %v739 = vunpack.c.l.b16 %v691
        %v740 = vunpack.c.h.b16 %v691
        %v741 = vunpack.c.l.b16 %v692
        %v742 = vunpack.c.l.b16 %v693
        %v743 = vunpack.c.h.b16 %v693
        %v744 = vunpack.c.l.b16 %v694
        %v745 = vunpack.c.l.b16 %v695
        %v746 = vunpack.c.h.b16 %v695
        %v747 = vunpack.c.l.b16 %v696
        %v748 = vpack.c.b16 %v724, %v721
        %v749 = vpack.c.b16 %v725, %v722
        %v750 = vpack.c.b16 %v726, %v723
        %v751 = vpack.c.b16 %v730, %v727
        %v752 = vpack.c.b16 %v731, %v728
        %v753 = vpack.c.b16 %v732, %v729
        %v754 = vpack.c.b16 %v736, %v733
        %v755 = vpack.c.b16 %v737, %v734
        %v756 = vpack.c.b16 %v738, %v735
        %v757 = vpack.c.b16 %v742, %v739
        %v758 = vpack.c.b16 %v743, %v740
        %v759 = vpack.c.b16 %v744, %v741
        %v760 = vpack.c.b16 %v745, %v745
        %v761 = vpack.c.b16 %v746, %v746
        %v762 = vpack.c.b16 %v747, %v747
        %vm775 = vcmask 588800
        %v777 = vsel %vm775, %v678, 0
        %vm779 = vcmask 1043456
        %v781 = vsel %vm779, %v760, 0
        %v784 = vsel %vm779, %v761, 0
        %v787 = vsel %vm779, %v762, 0
        %789 = vmatpush.bf16.msra.mxu0 0
        %790 = vmatpush.bf16.msra.mxu0 0
        %791 = vmatpush.bf16.msra.mxu0 0
        %792 = vmatpush.bf16.msra.mxu0 %v781
        %793 = vmatpush.bf16.msra.mxu0 %v757
        %794 = vmatpush.bf16.msra.mxu0 %v754
        %795 = vmatpush.bf16.msra.mxu0 %v751
        %796 = vmatpush.bf16.msra.mxu0 %v748
        %797 = vmatmul.bf16.gmra.mxu0 %v777
        %v798 = vpop.f32.mrf.mxu0
        %v799 = vadd.f32 %v701, %v798
        %v800 = vpop.f32.mrf.mxu0
        %801 = vdwg.mxu0
        %802 = vmatpush.bf16.msra.mxu0 0
        %803 = vmatpush.bf16.msra.mxu0 0
        %804 = vmatpush.bf16.msra.mxu0 0
        %805 = vmatpush.bf16.msra.mxu0 %v784
        %806 = vmatpush.bf16.msra.mxu0 %v758
        %807 = vmatpush.bf16.msra.mxu0 %v755
        %808 = vmatpush.bf16.msra.mxu0 %v752
        %809 = vmatpush.bf16.msra.mxu0 %v749
        %810 = vmatmul.bf16.gmra.mxu0 %v777
        %v811 = vpop.f32.mrf.mxu0
        %v812 = vadd.f32 %v701, %v811
        %v813 = vpop.f32.mrf.mxu0
        %814 = vdwg.mxu0
        %815 = vmatpush.bf16.msra.mxu0 0
        %816 = vmatpush.bf16.msra.mxu0 0
        %817 = vmatpush.bf16.msra.mxu0 0
        %818 = vmatpush.bf16.msra.mxu0 %v787
        %819 = vmatpush.bf16.msra.mxu0 %v759
        %820 = vmatpush.bf16.msra.mxu0 %v756
        %821 = vmatpush.bf16.msra.mxu0 %v753
        %822 = vmatpush.bf16.msra.mxu0 %v750
        %823 = vmatmul.bf16.gmra.mxu0 %v777
        %v824 = vpop.f32.mrf.mxu0
        %v825 = vadd.f32 %v701, %v824
        %v826 = vpop.f32.mrf.mxu0
        %827 = vdwg.mxu0
        %828 = vst [vmem:[%s289] sm:$0xff] %v799
        %829 = vst [vmem:[%s289 + $0x8] sm:$0xff] %v812
        %830 = vst [vmem:[%s289 + $0x10] sm:$0xff] %v825
        %s831 = sand.u32 %s148, 1
        %s832 = scalar_lea.sflag [#allocation6], %s831
        %s833 = sand.u32 %s148, 1
        %s834 = smul.addr %s833, 24
        %s835 = scalar_lea.vmem [#allocation9], %s834
        // Predicated region
        $region45: #{tpu_custom_call.1} parent=35 // pred_check
          %p836 = pneg %p158
        $region46: #{tpu_custom_call.1} parent=35 // pred_check_branch
          %838 = sbr.rel (%p836) target = $region48
        $region47: #{tpu_custom_call.1} parent=35 // pred_region
          %s839 = smul.u32 3, %s29
          %841 = vsyncadd %s832, 0
          %s842 = smul.addr %s28, 3
          %s843 = sadd.s32 %s839, %s842
          %s844 = smul.addr %s843, 8
          %s845 = scalar_lea.hbm %s4, %s844
          %s847 = sshll.u32 %s835, 4
          %s848 = int_to_ptr.vmem [resolvable:$true] %s847
          %s849 = sshll.u32 %s845, 4
          %s850 = int_to_ptr.hbm [resolvable:$true] %s849
          %852 = dma.vmem_to_hbm [thread:$0]  %s848, 384, %s850, %s832
        $region48: #{tpu_custom_call.1} parent=35 // pred_fallthru
          _
      $region36: #{tpu_custom_call.1} parent=5 // pred_fallthru
        _
      %p853 = scmp.le.s32.totalorder 2, %s19
      // Predicated region
      $region49: #{tpu_custom_call.1} parent=5 // pred_check
        %p854 = pneg %p853
      $region50: #{tpu_custom_call.1} parent=5 // pred_check_branch
        %856 = sbr.rel (%p854) target = $region52
      $region51: #{tpu_custom_call.1} parent=5 // pred_region
        %s857 = ssub.s32 %s19, 2
        // Predicated region
        $region53: #{tpu_custom_call.1} parent=51 // pred_check
          %p858 = pneg %p164
        $region54: #{tpu_custom_call.1} parent=51 // pred_check_branch
          %860 = sbr.rel (%p858) target = $region56
        $region55: #{tpu_custom_call.1} parent=51 // pred_region
          %s861 = sand.u32 %s149, 1
          %s862 = scalar_lea.sflag [#allocation6], %s861
          %s863 = sand.u32 %s149, 1
          %s864 = smul.addr %s863, 24
          %s865 = scalar_lea.vmem [#allocation9], %s864
          %867 = dma.done %s862, 384
        $region56: #{tpu_custom_call.1} parent=51 // pred_fallthru
          _
      $region52: #{tpu_custom_call.1} parent=5 // pred_fallthru
        _
    $region6: #{tpu_custom_call.1} parent=1 // loop_footer
      %s23 = sadd.s32 1, %s19
    $region7: #{tpu_custom_call.1} parent=1 // loop_footer_branch
      %18 = sbr.rel target = $region3
    $region8: #{tpu_custom_call.1} parent=1 // loop_exit
      _
    %868 = vsyncpa [#allocation5], 1
    %s869 = scalar_lea.sflag [#allocation5], 1
    %870 = vsyncpa %s869, 1
    %871 = vsyncpa [#allocation8], 1
    %s872 = scalar_lea.sflag [#allocation8], 1
    %873 = vsyncpa %s872, 1
    %874 = vsyncpa [#allocation6], 1
    %s875 = scalar_lea.sflag [#allocation6], 1
    %876 = vsyncpa %s875, 1

</llo_original>
